<compile_context>
chip_gen: v5e
topology: v5e:2x2
jax: 0.10.0
libtpu: 0.0.40
codegen_flags: <defaults>
</compile_context>

<pallas_src>
import jax
import jax.numpy as jnp
from jax.experimental import pallas as pl
from jax.experimental.pallas import tpu as pltpu


def _default_tile_bytes():
    """Per-input HBM tile budget, roughly tuned per TPU generation."""
    try:
        kind = jax.devices()[0].device_kind.lower()
    except Exception:
        return 4 << 20
    if "v6" in kind:
        return 8 << 20          # 128 MiB physical VMEM: big tiles amortize step cost
    if "v7" in kind:
        return 6 << 20          # 64 MiB/TC physical: keep double-buffered total under it
    if "v5e" in kind or ("v5" in kind and "lite" in kind):
        return 3 << 20          # 16 MiB scoped default on v5e: stay modest
    return 4 << 20


def _make_kernel(tr, hw, r, resident_w, ragged, lane_ok):
    n_lane_groups = hw // 128
    n_row_strips = tr // 8
    inv_hw = 1.0 / float(hw)

    def kernel(o_ref, t_ref, w_ref, part_ref):
        i = pl.program_id(0)
        # Upcast in-register after the DMA (inputs stream in native dtype).
        o = o_ref[...].astype(jnp.float32)
        t = t_ref[...].astype(jnp.float32)
        if resident_w:
            start = pl.multiple_of(i * tr, 8)
            w = w_ref[pl.ds(start, tr), :].astype(jnp.float32)
        else:
            w = w_ref[...].astype(jnp.float32)

        # Fused weighting: (o*w - t*w) == (o - t) * w.
        d = (o - t) * w
        dd = d * d

        if ragged:
            # Zero the overhanging rows of the last (partial) tile.
            rows = jax.lax.broadcasted_iota(jnp.int32, (tr, 1), 0) + i * tr
            dd = jnp.where(rows < r, dd, 0.0)

        if lane_ok:
            # Fold lane-groups (vreg columns): (tr, hw) -> (tr, 128). Pure VPU.
            acc = dd[:, 0:128]
            for g in range(1, n_lane_groups):
                acc = acc + dd[:, g * 128:(g + 1) * 128]
            # Fold sublane-groups (vreg rows): (tr, 128) -> (8, 128). Pure VPU.
            out = acc[0:8, :]
            for s in range(1, n_row_strips):
                out = out + acc[s * 8:(s + 1) * 8, :]
            part_ref[...] = (out * inv_hw).reshape(1, 8, 128)
        else:
            # Rare fallback when HW is not a multiple of 128.
            s = jnp.sum(dd) * inv_hw
            part_ref[...] = jnp.full(part_ref.shape, s, dtype=jnp.float32)

    return kernel


def joints_loss_sinkhorn(output, target, target_weight, use_target_weight=True,
                         *, tile_bytes=None):
    """output/target: (B, J, H, W); target_weight: (B, J, 1)."""
    b, j, h, wdim = output.shape
    hw = h * wdim
    r = b * j
    itemsize = jnp.dtype(output.dtype).itemsize

    # Contiguous, transpose-free, native-dtype views of the NCHW inputs.
    o = jnp.reshape(output, (r, hw))
    t = jnp.reshape(target, (r, hw))
    if use_target_weight:
        w = jnp.reshape(target_weight, (r, 1))
    else:
        w = jnp.ones((r, 1), dtype=jnp.float32)

    if tile_bytes is None:
        tile_bytes = _default_tile_bytes()

    # Rows per tile: multiple of 8, ~tile_bytes per input tile in HBM bytes.
    cap = max(8, (tile_bytes // (itemsize * hw)) // 8 * 8)
    r_pad8 = -(-r // 8) * 8
    cap = min(cap, r_pad8)
    tr = cap
    ragged = (r % tr != 0)
    if r % 8 == 0:
        # Prefer an exact divisor of r -> no ragged tile, no in-kernel mask.
        for cand in range(cap, 7, -8):
            if r % cand == 0:
                tr = cand
                ragged = False
                break
    num_tiles = -(-r // tr)
    r_pad = num_tiles * tr

    # The per-row weight is tiny (r*4 bytes): pad it (negligible) so the
    # resident weight block never reads out of bounds on the ragged tile.
    if r_pad != r:
        w = jnp.pad(w, ((0, r_pad - r), (0, 0)))
    # Keep the full weight resident in VMEM unless its padded VMEM footprint
    # (rows padded to lanes of 128) would be large.
    resident_w = (r_pad * 128 * 4) <= (2 << 20)
    lane_ok = (hw % 128 == 0)

    # VMEM budget: 2 inputs x 2 pipeline buffers (native dtype) + f32
    # intermediates + resident weight + margin.
    tile_in = tr * hw * itemsize
    tile_f32 = tr * hw * 4
    w_foot = (r_pad if resident_w else tr) * 128 * 4
    vmem_limit = 4 * tile_in + 2 * tile_f32 + 2 * w_foot + (2 << 20)
    vmem_limit = int(min(max(vmem_limit, 32 << 20), 100 << 20))

    in_specs = [
        pl.BlockSpec((tr, hw), lambda i: (i, 0)),   # output rows (native dtype)
        pl.BlockSpec((tr, hw), lambda i: (i, 0)),   # target rows (native dtype)
    ]
    if resident_w:
        in_specs.append(pl.BlockSpec((r_pad, 1), lambda i: (0, 0)))   # resident
    else:
        in_specs.append(pl.BlockSpec((tr, 1), lambda i: (i, 0)))      # per-tile

    cost = pl.CostEstimate(
        flops=3 * r * hw,
        transcendentals=0,
        bytes_accessed=int(2 * r * hw * itemsize
                           + r_pad * jnp.dtype(w.dtype).itemsize
                           + num_tiles * 8 * 128 * 4),
    )

    kernel = _make_kernel(tr, hw, r, resident_w, ragged, lane_ok)

    partials = pl.pallas_call(
        kernel,
        out_shape=jax.ShapeDtypeStruct((num_tiles, 8, 128), jnp.float32),
        grid_spec=pltpu.PrefetchScalarGridSpec(
            num_scalar_prefetch=0,
            grid=(num_tiles,),
            in_specs=in_specs,
            out_specs=pl.BlockSpec((1, 8, 128), lambda i: (i, 0, 0)),
        ),
        compiler_params=pltpu.CompilerParams(
            dimension_semantics=("parallel",),
            vmem_limit_bytes=vmem_limit),
        cost_estimate=cost,
    )(o, t, w)

    # Per-tile partials are already scaled by 1/HW inside the kernel.
    if lane_ok:
        total = jnp.sum(partials)
    else:
        total = jnp.sum(partials[:, 0, 0])
    # sum_j 0.5 * mean_{B*HW}(...) then / J  ==  0.5 * (sum / HW) / (J * B)
    return 0.5 * total / (j * b)


def _reference_loss(output, target, target_weight, use_target_weight=True):
    b, j, h, wdim = output.shape
    o = output.reshape(b, j, -1)
    t = target.reshape(b, j, -1)
    loss = 0.0
    for idx in range(j):
        hp = o[:, idx]
        hg = t[:, idx]
        if use_target_weight:
            tw = target_weight[:, idx]
            hp = hp * tw
            hg = hg * tw
        loss += 0.5 * jnp.mean((hp - hg) ** 2)
    return loss / j


if __name__ == "__main__":
    key = jax.random.PRNGKey(0)
    k1, k2, k3 = jax.random.split(key, 3)

    B, J, H, W = 2, 4, 16, 16
    output = jax.random.uniform(k1, (B, J, H, W), dtype=jnp.float32)
    target = jax.random.uniform(k2, (B, J, H, W), dtype=jnp.float32)
    target_weight = jax.random.uniform(k3, (B, J, 1), dtype=jnp.float32)

    loss = joints_loss_sinkhorn(output, target, target_weight,
                                use_target_weight=True)
    loss = jax.block_until_ready(loss)

    ref = _reference_loss(output, target, target_weight, use_target_weight=True)
    assert jnp.allclose(loss, ref, rtol=1e-5, atol=1e-7), (loss, ref)

    print("KERNEL_OK")
</pallas_src>

<mosaic_0001>
module attributes {stable_mosaic.version = 11 : i64} {
  func.func @kernel(%arg0: i32, %arg1: memref<8x256xf32, #tpu.memory_space<vmem>>, %arg2: memref<8x256xf32, #tpu.memory_space<vmem>>, %arg3: memref<8x1xf32, #tpu.memory_space<vmem>>, %arg4: memref<1x8x128xf32, #tpu.memory_space<vmem>>) attributes {dimension_semantics = [#tpu.dimension_semantics<parallel>], iteration_bounds = array<i64: 1>, scalar_prefetch = 0 : i64, scratch_operands = 0 : i64, tpu.core_type = #tpu.core_type<tc>, window_params = [{transform_indices = @transform_0, window_bounds = array<i64: 8, 256>}, {transform_indices = @transform_1, window_bounds = array<i64: 8, 256>}, {pipeline_mode = #tpu.pipeline_mode<synchronous>, transform_indices = @transform_2, window_bounds = array<i64: 8, 1>}, {transform_indices = @transform_3, window_bounds = array<i64: 1, 8, 128>}]} {
    %c0 = arith.constant 0 : index
    %c0_0 = arith.constant 0 : index
    %0 = vector.load %arg1[%c0, %c0_0] : memref<8x256xf32, #tpu.memory_space<vmem>>, vector<8x256xf32>
    %c0_1 = arith.constant 0 : index
    %c0_2 = arith.constant 0 : index
    %1 = vector.load %arg2[%c0_1, %c0_2] : memref<8x256xf32, #tpu.memory_space<vmem>>, vector<8x256xf32>
    %c8_i32 = arith.constant 8 : i32
    %2 = arith.muli %arg0, %c8_i32 : i32
    %3 = tpu.assume_multiple %2, 8 : i32
    %4 = arith.index_cast %3 : i32 to index
    %c0_3 = arith.constant 0 : index
    %5 = vector.load %arg3[%4, %c0_3] : memref<8x1xf32, #tpu.memory_space<vmem>>, vector<8x1xf32>
    %6 = arith.subf %0, %1 : vector<8x256xf32>
    %7 = vector.broadcast %5 : vector<8x1xf32> to vector<8x256xf32>
    %8 = arith.mulf %6, %7 : vector<8x256xf32>
    %9 = arith.mulf %8, %8 : vector<8x256xf32>
    %10 = vector.extract_strided_slice %9 {offsets = [0, 0], sizes = [8, 128], strides = [1, 1]} : vector<8x256xf32> to vector<8x128xf32>
    %11 = vector.extract_strided_slice %9 {offsets = [0, 128], sizes = [8, 128], strides = [1, 1]} : vector<8x256xf32> to vector<8x128xf32>
    %12 = arith.addf %10, %11 : vector<8x128xf32>
    %cst = arith.constant 3.906250e-03 : f32
    %13 = vector.broadcast %cst : f32 to vector<8x128xf32>
    %14 = arith.mulf %12, %13 : vector<8x128xf32>
    %15 = vector.shape_cast %14 : vector<8x128xf32> to vector<1x8x128xf32>
    %c0_4 = arith.constant 0 : index
    %c0_5 = arith.constant 0 : index
    %c0_6 = arith.constant 0 : index
    %16 = vector.load %arg4[%c0_4, %c0_5, %c0_6] : memref<1x8x128xf32, #tpu.memory_space<vmem>>, vector<1x8x128xf32>
    tpu.vector_store %arg4[%c0_4, %c0_5, %c0_6], %15 {strides = array<i32>} : memref<1x8x128xf32, #tpu.memory_space<vmem>>, vector<1x8x128xf32>,
    return
  }
  func.func @transform_0(%arg0: i32) -> (i32, i32) {
    %c0_i32 = arith.constant 0 : i32
    %c0_i32_0 = arith.constant 0 : i32
    return %arg0, %c0_i32 : i32, i32
  }
  func.func @transform_1(%arg0: i32) -> (i32, i32) {
    %c0_i32 = arith.constant 0 : i32
    %c0_i32_0 = arith.constant 0 : i32
    return %arg0, %c0_i32 : i32, i32
  }
  func.func @transform_2(%arg0: i32) -> (i32, i32) {
    %c0_i32 = arith.constant 0 : i32
    %c0_i32_0 = arith.constant 0 : i32
    %c0_i32_1 = arith.constant 0 : i32
    return %c0_i32, %c0_i32_0 : i32, i32
  }
  func.func @transform_3(%arg0: i32) -> (i32, i32, i32) {
    %c0_i32 = arith.constant 0 : i32
    %c0_i32_0 = arith.constant 0 : i32
    %c0_i32_1 = arith.constant 0 : i32
    return %arg0, %c0_i32, %c0_i32_0 : i32, i32, i32
  }
}

</mosaic_0001>

<llo_original>
// kernel: tpu_custom_call.1
$region0: #{tpu_custom_call.1}
  #allocation0 [shape = 'u32[]', space=smem, size = 0x4, offset = 0x4, fixed_abs, tag = 'smem constant byte address 0x4 - core index']
  #allocation1 [shape = 'u32[72,128]{1,0:T(1,128)}', space=vmem, size = 0x9000, scoped, tag = 'internal scratch']
  %s0 = inlined_call_operand.hbm [shape: f32[8,256], index: 0, kind: input, shape index: {}]
  %s1 = inlined_call_operand.hbm [shape: f32[8,256], index: 1, kind: input, shape index: {}]
  %s2 = inlined_call_operand.vmem [shape: f32[8,1], index: 2, kind: input, shape index: {}]
  %s3 = inlined_call_operand.hbm [shape: f32[1,8,128], index: 3, kind: output, shape index: {}]
  %s4 = sld [smem:[#allocation0]]
  $region30: #{tpu_custom_call.1} parent=0
    _
  %s6 = ssub.s32 1, %s4
  %s7 = scalar_select 0, %s6, %s4
  $region1: #{tpu_custom_call.1} parent=0
    #allocation2 [shape = 'u8[8192]{0}', space=vmem, size = 0x2000, scoped, tag = 'input window, operand 0, single buffered']
    #allocation3 [shape = 's32[1]{0}', space=sflag, size = 0x4, scoped, tag = 'scoped memory for tpu_custom_call.1']
    #allocation4 [shape = 's32[1]{0}', space=sflag, size = 0x4, scoped, tag = 'scoped memory for tpu_custom_call.1']
    #allocation5 [shape = 'u8[8192]{0}', space=vmem, size = 0x2000, scoped, tag = 'input window, operand 1, single buffered']
    #allocation6 [shape = 's32[1]{0}', space=sflag, size = 0x4, scoped, tag = 'scoped memory for tpu_custom_call.1']
    #allocation7 [shape = 'u8[4096]{0}', space=vmem, size = 0x1000, scoped, tag = 'output window, operand 0, single buffered']
    %8 = vsyncpa [#allocation3], 0
    %9 = vsyncpa [#allocation6], 0
    %10 = vsyncpa [#allocation4], 0
    // Predicated region
    $region2: #{tpu_custom_call.1} parent=1 // pred_check
      _
    $region3: #{tpu_custom_call.1} parent=1 // pred_check_branch
      %12 = sbr.rel (0) target = $region5
    $region4: #{tpu_custom_call.1} parent=1 // pred_region
      %14 = vsyncadd [#allocation3], 0
      %s16 = sshll.u32 %s0, 4
      %s17 = int_to_ptr.hbm [resolvable:$true] %s16
      %s18 = sshll.u32 [#allocation2], 4
      %s19 = int_to_ptr.vmem [resolvable:$true] %s18
      %21 = dma.hbm_to_vmem [thread:$0]  %s17, 256, %s19, [#allocation3]
    $region5: #{tpu_custom_call.1} parent=1 // pred_fallthru
      _
    // Predicated region
    $region6: #{tpu_custom_call.1} parent=1 // pred_check
      _
    $region7: #{tpu_custom_call.1} parent=1 // pred_check_branch
      %23 = sbr.rel (0) target = $region9
    $region8: #{tpu_custom_call.1} parent=1 // pred_region
      %25 = vsyncadd [#allocation6], 0
      %s27 = sshll.u32 %s1, 4
      %s28 = int_to_ptr.hbm [resolvable:$true] %s27
      %s29 = sshll.u32 [#allocation5], 4
      %s30 = int_to_ptr.vmem [resolvable:$true] %s29
      %32 = dma.hbm_to_vmem [thread:$0]  %s28, 256, %s30, [#allocation6]
    $region9: #{tpu_custom_call.1} parent=1 // pred_fallthru
      _
    // Predicated region
    $region10: #{tpu_custom_call.1} parent=1 // pred_check
      _
    $region11: #{tpu_custom_call.1} parent=1 // pred_check_branch
      %34 = sbr.rel (0) target = $region13
    $region12: #{tpu_custom_call.1} parent=1 // pred_region
      _
    $region13: #{tpu_custom_call.1} parent=1 // pred_fallthru
      _
    // Predicated region
    $region14: #{tpu_custom_call.1} parent=1 // pred_check
      _
    $region15: #{tpu_custom_call.1} parent=1 // pred_check_branch
      %36 = sbr.rel (0) target = $region17
    $region16: #{tpu_custom_call.1} parent=1 // pred_region
      %38 = dma.done [#allocation3], 256
    $region17: #{tpu_custom_call.1} parent=1 // pred_fallthru
      _
    // Predicated region
    $region18: #{tpu_custom_call.1} parent=1 // pred_check
      _
    $region19: #{tpu_custom_call.1} parent=1 // pred_check_branch
      %40 = sbr.rel (0) target = $region21
    $region20: #{tpu_custom_call.1} parent=1 // pred_region
      %42 = dma.done [#allocation6], 256
    $region21: #{tpu_custom_call.1} parent=1 // pred_fallthru
      _
    %v43 = vld [vmem:[#allocation2] sm:$0xff]
    %v44 = vld [vmem:[#allocation2 + $0x8] sm:$0xff]
    %v45 = vld [vmem:[#allocation5] sm:$0xff]
    %v46 = vld [vmem:[#allocation5 + $0x8] sm:$0xff]
    %s47 = smul.u32 0, 8
    %s48 = scalar_lea.vmem %s2, %s47
    %v49 = vld [vmem:[%s48] sm:$0xff]
    %v50 = vsub.f32 %v43, %v45
    %v51 = vsub.f32 %v44, %v46
    %53 = vset.pattern.permute.xlu0 0
    %54 = vperm.xlu0 %53, %v49
    %v55 = vpop.permute.xlu0 %54
    %v57 = vmul.f32 %v50, %v55
    %v58 = vmul.f32 %v51, %v55
    %v59 = vmul.f32 %v57, %v57
    %v60 = vmul.f32 %v58, %v58
    %v61 = vadd.f32 %v59, %v60
    %v62 = vmul.f32 %v61, 0.00390625
    %63 = vst [vmem:[#allocation7] sm:$0xff] %v62
    // Predicated region
    $region22: #{tpu_custom_call.1} parent=1 // pred_check
      _
    $region23: #{tpu_custom_call.1} parent=1 // pred_check_branch
      %65 = sbr.rel (0) target = $region25
    $region24: #{tpu_custom_call.1} parent=1 // pred_region
      %67 = vsyncadd [#allocation4], 0
      %s69 = sshll.u32 [#allocation7], 4
      %s70 = int_to_ptr.vmem [resolvable:$true] %s69
      %s71 = sshll.u32 %s3, 4
      %s72 = int_to_ptr.hbm [resolvable:$true] %s71
      %74 = dma.vmem_to_hbm [thread:$0]  %s70, 128, %s72, [#allocation4]
    $region25: #{tpu_custom_call.1} parent=1 // pred_fallthru
      _
    // Predicated region
    $region26: #{tpu_custom_call.1} parent=1 // pred_check
      _
    $region27: #{tpu_custom_call.1} parent=1 // pred_check_branch
      %76 = sbr.rel (0) target = $region29
    $region28: #{tpu_custom_call.1} parent=1 // pred_region
      %78 = dma.done [#allocation4], 128
    $region29: #{tpu_custom_call.1} parent=1 // pred_fallthru
      _
    %79 = vsyncpa [#allocation3], 1
    %80 = vsyncpa [#allocation6], 1
    %81 = vsyncpa [#allocation4], 1

</llo_original>
